<compile_context>
chip_gen: v7x
topology: tpu7x:2x2x1
jax: 0.10.0
libtpu: 0.0.40
codegen_flags: <defaults>
</compile_context>

<pallas_src>
import functools
import math

import jax
import jax.numpy as jnp
from jax.experimental import pallas as pl
from jax.experimental.pallas import tpu as pltpu

EPS = 1e-5


def _round_up(x, m):
    return ((x + m - 1) // m) * m


@functools.lru_cache(maxsize=None)
def _tpu_hw_config():
    """Returns (physical_vmem_bytes, is_v7x_like).

    Falls back to a conservative (64 MiB, v7x-like) config if the query fails,
    so the VMEM budget is always safe on every generation.
    """
    vmem = 64 * 1024 * 1024
    try:
        vmem = int(pltpu.get_tpu_info().vmem_capacity_bytes)
    except Exception:
        pass
    # v7x: 64 MiB VMEM per TensorCore (2 TCs/chip); v5e/v6e: 128 MiB (1 TC).
    is_v7x_like = vmem <= 96 * 1024 * 1024
    return vmem, is_v7x_like


def _make_kernel(eps, has_bias):
    """Build a LayerNorm kernel with eps / bias-presence baked in."""

    def kernel(x_ref, w_ref, *rest):
        if has_bias:
            b_ref, o_ref = rest
        else:
            (o_ref,) = rest
        # x_ref: (tile_rows, D); w_ref / b_ref: (1, D).  The block's last dim is
        # the full (true) D, so the reductions need no lane masking and the
        # output is written back un-padded (masked vst for D % 128 != 0 is far
        # cheaper than an extra pad/slice HBM round trip).
        x = x_ref[...].astype(jnp.float32)
        inv_d = 1.0 / float(x.shape[-1])
        # Two-pass statistics in f32 (mean first, then centered sum of squares):
        # avoids E[x^2] - mean^2 cancellation; zero extra HBM cost since the
        # tile is resident in VMEM.
        mean = jnp.sum(x, axis=-1, keepdims=True) * inv_d
        xc = x - mean
        var = jnp.sum(xc * xc, axis=-1, keepdims=True) * inv_d
        inv = jax.lax.rsqrt(var + eps)
        y = xc * inv * w_ref[...].astype(jnp.float32)
        if has_bias:
            y = y + b_ref[...].astype(jnp.float32)
        o_ref[...] = y.astype(o_ref.dtype)

    return kernel


def _choose_tile_rows(rows, d, itemsize, is_v7x):
    """Row tile sized by HBM bytes moved per grid step (input + output)."""
    sub = {4: 8, 2: 16, 1: 32}.get(itemsize, 8)
    bytes_per_row = max(2 * d * itemsize, 1)  # read x tile + write out tile
    # ~4 MiB of HBM traffic per step on v7x, ~8 MiB on v5e/v6e: big enough to
    # amortize the ~0.35 us per-step overhead, small enough to double-buffer.
    target = (4 if is_v7x else 8) * 1024 * 1024
    tr = max(sub, (target // bytes_per_row) // sub * sub)
    tr = min(tr, 8192)  # byte-based sanity cap (no hard 1024-row cap)
    if is_v7x:
        # Two TensorCores: keep >= ~4 grid steps for load balance, but never
        # shrink a step below ~2 MiB of HBM traffic.
        min_tr = max(sub, ((2 * 1024 * 1024) // bytes_per_row) // sub * sub)
        balanced = max(sub, _round_up(pl.cdiv(rows, 4), sub))
        tr = min(tr, max(balanced, min_tr))
    # v5e/v6e: single TensorCore -- the grid is a serial loop, never shrink the
    # tile just to create more steps.
    if tr >= rows:
        return rows  # single block; block dim == full array dim is always legal
    return tr


@functools.partial(jax.jit, static_argnames=("eps",))
def layer_norm(x, weight, bias=None, *, eps=EPS):
    """LayerNorm over the last dim, matching F.layer_norm(..., eps=1e-5)."""
    orig_shape = x.shape
    d = orig_shape[-1]
    rows = math.prod(orig_shape[:-1]) if len(orig_shape) > 1 else 1
    itemsize = jnp.dtype(x.dtype).itemsize

    x2 = x.reshape(rows, d)
    w2 = weight.reshape(1, d)
    b2 = bias.reshape(1, d) if bias is not None else None

    vmem_phys, is_v7x = _tpu_hw_config()
    tr = _choose_tile_rows(rows, d, itemsize, is_v7x)
    grid = (pl.cdiv(rows, tr),)

    x_spec = pl.BlockSpec((tr, d), lambda i: (i, 0))
    p_spec = pl.BlockSpec((1, d), lambda i: (0, 0))
    o_spec = pl.BlockSpec((tr, d), lambda i: (i, 0))

    # VMEM budget: double-buffered in/out tiles + ~4 f32-tile temporaries,
    # capped at ~75% of physical VMEM with >= 16 MiB headroom (v7x: 64 MiB
    # physical -> ~48 MiB cap; v5e/v6e: 128 MiB -> ~96 MiB cap).
    tile_io_bytes = tr * d * itemsize
    tile_f32_bytes = tr * d * 4
    needed = 4 * tile_io_bytes + 4 * tile_f32_bytes + (4 << 20)
    cap = min(int(0.75 * vmem_phys), vmem_phys - 16 * 1024 * 1024)
    vmem_limit = int(min(max(needed, 32 * 1024 * 1024), cap))

    has_bias = b2 is not None
    kernel = _make_kernel(eps, has_bias)
    in_specs = [x_spec, p_spec] + ([p_spec] if has_bias else [])
    operands = (x2, w2, b2) if has_bias else (x2, w2)

    out = pl.pallas_call(
        kernel,
        out_shape=jax.ShapeDtypeStruct((rows, d), x.dtype),
        grid_spec=pltpu.PrefetchScalarGridSpec(
            num_scalar_prefetch=0,
            grid=grid,
            in_specs=in_specs,
            out_specs=o_spec,
        ),
        compiler_params=pltpu.CompilerParams(
            dimension_semantics=("parallel",),
            vmem_limit_bytes=vmem_limit,
        ),
    )(*operands)

    return out.reshape(orig_shape)


def _reference_layer_norm(x, weight, bias):
    xf = x.astype(jnp.float32)
    mean = jnp.mean(xf, axis=-1, keepdims=True)
    var = jnp.mean((xf - mean) ** 2, axis=-1, keepdims=True)
    y = (xf - mean) * jax.lax.rsqrt(var + EPS) * weight.astype(jnp.float32)
    if bias is not None:
        y = y + bias.astype(jnp.float32)
    return y.astype(x.dtype)


if __name__ == "__main__":
    B, T, D = 2, 8, 32
    key = jax.random.PRNGKey(0)
    k1, k2 = jax.random.split(key)
    x = jax.random.normal(k1, (B, T, D), dtype=jnp.float32)

    # Parameters per the module __init__: weight = ones(ndim), bias = zeros(ndim).
    weight = jnp.ones((D,), dtype=jnp.float32)
    bias = jnp.zeros((D,), dtype=jnp.float32)

    out = jax.block_until_ready(layer_norm(x, weight, bias))
    ref = _reference_layer_norm(x, weight, bias)
    assert out.shape == x.shape and out.dtype == x.dtype
    assert jnp.allclose(out, ref, atol=1e-5, rtol=1e-5)

    # bias=None path (module constructed with bias=False).
    out_nb = jax.block_until_ready(layer_norm(x, weight, None))
    ref_nb = _reference_layer_norm(x, weight, None)
    assert jnp.allclose(out_nb, ref_nb, atol=1e-5, rtol=1e-5)

    # Non-multiple-of-128 hidden dim with non-trivial affine params and a mean
    # offset: exercises the un-padded (masked-store) path and the two-pass stats.
    D2 = 96
    x2 = jax.random.normal(k2, (4, 5, D2), dtype=jnp.float32) * 3.0 + 2.0
    w2 = jnp.linspace(0.5, 1.5, D2, dtype=jnp.float32)
    b2 = jnp.linspace(-0.5, 0.5, D2, dtype=jnp.float32)
    out2 = jax.block_until_ready(layer_norm(x2, w2, b2))
    ref2 = _reference_layer_norm(x2, w2, b2)
    assert jnp.allclose(out2, ref2, atol=1e-5, rtol=1e-5)

    print("KERNEL_OK")
</pallas_src>

<mosaic_0001>
module attributes {stable_mosaic.version = 11 : i64} {
  func.func @kernel(%arg0: i32, %arg1: memref<16x32xf32, #tpu.memory_space<vmem>>, %arg2: memref<1x32xf32, #tpu.memory_space<vmem>>, %arg3: memref<1x32xf32, #tpu.memory_space<vmem>>, %arg4: memref<16x32xf32, #tpu.memory_space<vmem>>) attributes {dimension_semantics = [#tpu.dimension_semantics<parallel>], iteration_bounds = array<i64: 1>, scalar_prefetch = 0 : i64, scratch_operands = 0 : i64, tpu.core_type = #tpu.core_type<tc>, window_params = [{transform_indices = @transform_0, window_bounds = array<i64: 16, 32>}, {pipeline_mode = #tpu.pipeline_mode<synchronous>, transform_indices = @transform_1, window_bounds = array<i64: 1, 32>}, {pipeline_mode = #tpu.pipeline_mode<synchronous>, transform_indices = @transform_2, window_bounds = array<i64: 1, 32>}, {transform_indices = @transform_3, window_bounds = array<i64: 16, 32>}]} {
    %c0 = arith.constant 0 : index
    %c0_0 = arith.constant 0 : index
    %0 = vector.load %arg1[%c0, %c0_0] : memref<16x32xf32, #tpu.memory_space<vmem>>, vector<16x32xf32>
    %cst = arith.constant dense<0.000000e+00> : vector<16xf32>
    %1 = vector.multi_reduction <add>, %0, %cst [1] : vector<16x32xf32> to vector<16xf32>
    %2 = vector.shape_cast %1 : vector<16xf32> to vector<16x1xf32>
    %cst_1 = arith.constant 3.125000e-02 : f32
    %3 = vector.broadcast %cst_1 : f32 to vector<16x1xf32>
    %4 = arith.mulf %2, %3 : vector<16x1xf32>
    %5 = vector.broadcast %4 : vector<16x1xf32> to vector<16x32xf32>
    %6 = arith.subf %0, %5 : vector<16x32xf32>
    %7 = arith.mulf %6, %6 : vector<16x32xf32>
    %cst_2 = arith.constant dense<0.000000e+00> : vector<16xf32>
    %8 = vector.multi_reduction <add>, %7, %cst_2 [1] : vector<16x32xf32> to vector<16xf32>
    %9 = vector.shape_cast %8 : vector<16xf32> to vector<16x1xf32>
    %cst_3 = arith.constant 3.125000e-02 : f32
    %10 = vector.broadcast %cst_3 : f32 to vector<16x1xf32>
    %11 = arith.mulf %9, %10 : vector<16x1xf32>
    %cst_4 = arith.constant 9.99999974E-6 : f32
    %12 = vector.broadcast %cst_4 : f32 to vector<16x1xf32>
    %13 = arith.addf %11, %12 : vector<16x1xf32>
    %14 = math.rsqrt %13 : vector<16x1xf32>
    %15 = vector.broadcast %14 : vector<16x1xf32> to vector<16x32xf32>
    %16 = arith.mulf %6, %15 : vector<16x32xf32>
    %c0_5 = arith.constant 0 : index
    %c0_6 = arith.constant 0 : index
    %17 = vector.load %arg2[%c0_5, %c0_6] : memref<1x32xf32, #tpu.memory_space<vmem>>, vector<1x32xf32>
    %18 = vector.broadcast %17 : vector<1x32xf32> to vector<16x32xf32>
    %19 = arith.mulf %16, %18 : vector<16x32xf32>
    %c0_7 = arith.constant 0 : index
    %c0_8 = arith.constant 0 : index
    %20 = vector.load %arg3[%c0_7, %c0_8] : memref<1x32xf32, #tpu.memory_space<vmem>>, vector<1x32xf32>
    %21 = vector.broadcast %20 : vector<1x32xf32> to vector<16x32xf32>
    %22 = arith.addf %19, %21 : vector<16x32xf32>
    %c0_9 = arith.constant 0 : index
    %c0_10 = arith.constant 0 : index
    %23 = vector.load %arg4[%c0_9, %c0_10] : memref<16x32xf32, #tpu.memory_space<vmem>>, vector<16x32xf32>
    tpu.vector_store %arg4[%c0_9, %c0_10], %22 {strides = array<i32>} : memref<16x32xf32, #tpu.memory_space<vmem>>, vector<16x32xf32>,
    return
  }
  func.func @transform_0(%arg0: i32) -> (i32, i32) {
    %c0_i32 = arith.constant 0 : i32
    %c0_i32_0 = arith.constant 0 : i32
    return %arg0, %c0_i32 : i32, i32
  }
  func.func @transform_1(%arg0: i32) -> (i32, i32) {
    %c0_i32 = arith.constant 0 : i32
    %c0_i32_0 = arith.constant 0 : i32
    %c0_i32_1 = arith.constant 0 : i32
    return %c0_i32, %c0_i32_0 : i32, i32
  }
  func.func @transform_2(%arg0: i32) -> (i32, i32) {
    %c0_i32 = arith.constant 0 : i32
    %c0_i32_0 = arith.constant 0 : i32
    %c0_i32_1 = arith.constant 0 : i32
    return %c0_i32, %c0_i32_0 : i32, i32
  }
  func.func @transform_3(%arg0: i32) -> (i32, i32) {
    %c0_i32 = arith.constant 0 : i32
    %c0_i32_0 = arith.constant 0 : i32
    return %arg0, %c0_i32 : i32, i32
  }
}

</mosaic_0001>

<llo_original>
// kernel: layer_norm.1
$region0: #{layer_norm.1}
  #allocation0 [shape = 'u32[]', space=smem, size = 0x4, offset = 0x4, fixed_abs, tag = 'smem constant byte address 0x4 - core index']
  #allocation1 [shape = 'u32[144,128]{1,0:T(1,128)}', space=vmem, size = 0x12000, scoped, tag = 'internal scratch']
  %s0 = inlined_call_operand.hbm [shape: f32[16,32], index: 0, kind: input, shape index: {}]
  %s1 = inlined_call_operand.vmem [shape: f32[1,32], index: 1, kind: input, shape index: {}]
  %s2 = inlined_call_operand.vmem [shape: f32[1,32], index: 2, kind: input, shape index: {}]
  %s3 = inlined_call_operand.hbm [shape: f32[16,32], index: 3, kind: output, shape index: {}]
  %s4 = sld [smem:[#allocation0]]
  $region26: #{layer_norm.1} parent=0
    _
  %s6 = ssub.s32 1, %s4
  %s7 = scalar_select 0, %s6, %s4
  $region1: #{layer_norm.1} parent=0
    #allocation2 [shape = 'u8[8192]{0}', space=vmem, size = 0x2000, scoped, tag = 'input window, operand 0, single buffered']
    #allocation3 [shape = 's32[1]{0}', space=sflag, size = 0x4, scoped, tag = 'scoped memory for layer_norm.1']
    #allocation4 [shape = 's32[1]{0}', space=sflag, size = 0x4, scoped, tag = 'scoped memory for layer_norm.1']
    #allocation5 [shape = 'u8[8192]{0}', space=vmem, size = 0x2000, scoped, tag = 'output window, operand 0, single buffered']
    %8 = vsyncpa [#allocation3], 0
    %9 = vsyncpa [#allocation4], 0
    // Predicated region
    $region2: #{layer_norm.1} parent=1 // pred_check
      _
    $region3: #{layer_norm.1} parent=1 // pred_check_branch
      %11 = sbr.rel (0) target = $region5
    $region4: #{layer_norm.1} parent=1 // pred_region
      %s13 = ssub.s32 256, 256
      %14 = vsyncadd [#allocation3], %s13
      %s15 = sshll.u32 [#allocation2], 4
      %s16 = int_to_ptr.vmem [resolvable:$true] %s15
      %21 = dma.hbm_to_vmem [thread:$0]  %s0, 256, %s16, [#allocation3], 128, 128, 8
    $region5: #{layer_norm.1} parent=1 // pred_fallthru
      _
    // Predicated region
    $region6: #{layer_norm.1} parent=1 // pred_check
      _
    $region7: #{layer_norm.1} parent=1 // pred_check_branch
      %23 = sbr.rel (0) target = $region9
    $region8: #{layer_norm.1} parent=1 // pred_region
      _
    $region9: #{layer_norm.1} parent=1 // pred_fallthru
      _
    // Predicated region
    $region10: #{layer_norm.1} parent=1 // pred_check
      _
    $region11: #{layer_norm.1} parent=1 // pred_check_branch
      %25 = sbr.rel (0) target = $region13
    $region12: #{layer_norm.1} parent=1 // pred_region
      _
    $region13: #{layer_norm.1} parent=1 // pred_fallthru
      _
    // Predicated region
    $region14: #{layer_norm.1} parent=1 // pred_check
      _
    $region15: #{layer_norm.1} parent=1 // pred_check_branch
      %27 = sbr.rel (0) target = $region17
    $region16: #{layer_norm.1} parent=1 // pred_region
      %28 = dma.done [#allocation3], 256
    $region17: #{layer_norm.1} parent=1 // pred_fallthru
      _
    %v29 = vld [vmem:[#allocation2] sm:$0xff]
    %v30 = vld [vmem:[#allocation2 + $0x8] sm:$0xff]
    %vm31 = vcmask 261120
    %v32 = vsel %vm31, %v29, 0.0
    %33 = vadd.xlane.f32.xlu0 %v32
    %v34 = vpop.xlane.xlu0 %33
    %v35 = vsel %vm31, %v30, 0.0
    %36 = vadd.xlane.f32.xlu0 %v35
    %v37 = vpop.xlane.xlu0 %36
    %v38 = vmul.f32 %v34, 0.03125
    %v39 = vmul.f32 %v37, 0.03125
    %v40 = vsub.f32 %v29, %v38
    %v41 = vsub.f32 %v30, %v39
    %v42 = vmul.f32 %v40, %v40
    %v43 = vmul.f32 %v41, %v41
    %v44 = vsel %vm31, %v42, 0.0
    %45 = vadd.xlane.f32.xlu0 %v44
    %v46 = vpop.xlane.xlu0 %45
    %v47 = vsel %vm31, %v43, 0.0
    %48 = vadd.xlane.f32.xlu0 %v47
    %v49 = vpop.xlane.xlu0 %48
    %v50 = vmul.f32 %v46, 0.03125
    %v51 = vmul.f32 %v49, 0.03125
    %v52 = vadd.f32 %v50, 1e-05
    %v53 = vadd.f32 %v51, 1e-05
    %v54 = vrsqrt.pop %v52
    %v55 = vrsqrt.pop %v53
    %v56 = vmul.f32 %v40, %v54
    %v57 = vmul.f32 %v41, %v55
    %v58 = vld [vmem:[%s1] sm:$0x1]
    %v60 = vlaneseq
    %v61 = vshrl.u32 %v60, 7
    %v62 = vsub.s32 0, %v61
    %v63 = vrot.slane %v58, %v62
    %v65 = vmul.f32 %v56, %v63
    %v66 = vmul.f32 %v57, %v63
    %v67 = vld [vmem:[%s2] sm:$0x1]
    %v69 = vlaneseq
    %v70 = vshrl.u32 %v69, 7
    %v71 = vsub.s32 0, %v70
    %v72 = vrot.slane %v67, %v71
    %v74 = vadd.f32 %v65, %v72
    %v75 = vadd.f32 %v66, %v72
    %76 = vst.msk [vmem:[#allocation5] sm:$0xff] %vm31, %v74
    %77 = vst.msk [vmem:[#allocation5 + $0x8] sm:$0xff] %vm31, %v75
    // Predicated region
    $region18: #{layer_norm.1} parent=1 // pred_check
      _
    $region19: #{layer_norm.1} parent=1 // pred_check_branch
      %79 = sbr.rel (0) target = $region21
    $region20: #{layer_norm.1} parent=1 // pred_region
      %s81 = ssub.s32 256, 256
      %82 = vsyncadd [#allocation4], %s81
      %s83 = sshll.u32 [#allocation5], 4
      %s84 = int_to_ptr.vmem [resolvable:$true] %s83
      %89 = dma.vmem_to_hbm [thread:$0]  %s84, 256, %s3, [#allocation4], 128, 128, 8
    $region21: #{layer_norm.1} parent=1 // pred_fallthru
      _
    // Predicated region
    $region22: #{layer_norm.1} parent=1 // pred_check
      _
    $region23: #{layer_norm.1} parent=1 // pred_check_branch
      %91 = sbr.rel (0) target = $region25
    $region24: #{layer_norm.1} parent=1 // pred_region
      %92 = dma.done [#allocation4], 256
    $region25: #{layer_norm.1} parent=1 // pred_fallthru
      _
    %93 = vsyncpa [#allocation3], 1
    %94 = vsyncpa [#allocation4], 1

</llo_original>
